<compile_context>
chip_gen: v6e
topology: v6e:2x2x1
jax: 0.10.0
libtpu: 0.0.40
codegen_flags: <defaults>
</compile_context>

<pallas_src>
import functools

import jax
import jax.numpy as jnp
from jax import lax
from jax.experimental import pallas as pl
from jax.experimental.pallas import tpu as pltpu

EPSILON = 1e-06

LANES = 128            # lane width; last dim of every block
SUBLANES = 8           # f32 sublane tile
MAX_TILE_ROWS = 1024   # rows per input block: 1024*128*4B = 512 KiB


def _cdiv(a, b):
    return -(-a // b)


def _dice_partial_kernel(pred_ref, mask_ref, acc_i_ref, acc_s_ref, *,
                         tile_rows, tiles_per_slice, rows_total, needs_mask):
    """Accumulates per-slice partials of sum(pred*mask) and sum(pred)+sum(mask).

    Grid = (num_slices, tiles_per_slice); axis 0 is 'parallel' (per-slice
    output blocks), axis 1 is the 'arbitrary' reduction axis.  The (8,128)
    output blocks stay resident across axis 1 and act as vector accumulators:
    zeroed at j == 0, accumulated with pure VPU ops every step, written back
    after the slice's last tile.
    """
    s = pl.program_id(0)   # slice index (parallel)
    j = pl.program_id(1)   # tile index within the slice (reduction)

    @pl.when(j == 0)
    def _():
        acc_i_ref[...] = jnp.zeros_like(acc_i_ref)
        acc_s_ref[...] = jnp.zeros_like(acc_s_ref)

    if needs_mask:
        # Logical (unclamped) first row covered by this grid step; rows at or
        # past rows_total are garbage (ragged DMA tail or a clamped phantom
        # tile) and must be zeroed before any arithmetic touches them.
        row0 = (s * tiles_per_slice + j) * tile_rows
        base_rows = lax.broadcasted_iota(jnp.int32, (SUBLANES, LANES), 0)

    acc_i = acc_i_ref[...]
    acc_s = acc_s_ref[...]
    # Statically unrolled walk over 8-row chunks: (8,128)-tile-aligned slices
    # of the VMEM block plus VPU multiply/adds only (no per-step XLU reduce).
    for k0 in range(0, tile_rows, SUBLANES):
        pk = pred_ref[k0:k0 + SUBLANES, :].astype(jnp.float32)
        mk = mask_ref[k0:k0 + SUBLANES, :].astype(jnp.float32)
        if needs_mask:
            valid = (row0 + k0 + base_rows) < rows_total
            pk = jnp.where(valid, pk, 0.0)
            mk = jnp.where(valid, mk, 0.0)
        acc_i = acc_i + pk * mk
        acc_s = acc_s + (pk + mk)

    acc_i_ref[...] = acc_i
    acc_s_ref[...] = acc_s


@jax.jit
def dice_loss(pred, mask):
    # Flatten at native dtype; the kernel upcasts per tile, so bf16/int
    # inputs would stream at their native (narrower) HBM footprint.
    pred_flat = jnp.ravel(pred)
    mask_flat = jnp.ravel(mask)
    n = pred_flat.shape[0]

    # Lane-dense 2-D view.  Pad only to a multiple of 128 lanes (and to one
    # full (8,128) tile for tiny inputs); zero padding is sum-neutral and is
    # a no-op for the test shape.
    rows_total = max(_cdiv(n, LANES), SUBLANES)
    n_padded = rows_total * LANES
    if n_padded != n:
        pred_flat = jnp.pad(pred_flat, (0, n_padded - n))
        mask_flat = jnp.pad(mask_flat, (0, n_padded - n))
    pred2d = pred_flat.reshape(rows_total, LANES)
    mask2d = mask_flat.reshape(rows_total, LANES)

    # Block sizing: as large as possible (<= MAX_TILE_ROWS), always a
    # multiple of 8 sublanes and never larger than the array, so small
    # inputs get a single full-array block and a single grid step.
    tile_rows = min(MAX_TILE_ROWS, (rows_total // SUBLANES) * SUBLANES)
    total_tiles = _cdiv(rows_total, tile_rows)

    # Split the row stream into (up to) two slices -> two TensorCores on v7x
    # megacore; on single-TC chips this is just a sequential outer loop.
    num_slices = 2 if total_tiles >= 2 else 1
    tiles_per_slice = _cdiv(total_tiles, num_slices)
    covered_rows = num_slices * tiles_per_slice * tile_rows
    needs_mask = covered_rows != rows_total

    if num_slices * tiles_per_slice == total_tiles:
        def in_map(s, j):
            return (s * tiles_per_slice + j, 0)
    else:
        # Odd tile count: the last slice's phantom trailing tile is clamped
        # onto the last real tile (never a fully out-of-bounds DMA) and is
        # zeroed entirely by the in-kernel row mask.
        def in_map(s, j):
            return (jnp.minimum(s * tiles_per_slice + j, total_tiles - 1), 0)

    kernel = functools.partial(
        _dice_partial_kernel,
        tile_rows=tile_rows,
        tiles_per_slice=tiles_per_slice,
        rows_total=rows_total,
        needs_mask=needs_mask,
    )

    part_shape = jax.ShapeDtypeStruct((num_slices * SUBLANES, LANES),
                                      jnp.float32)
    out_map = lambda s, j: (s, 0)

    partial_i, partial_s = pl.pallas_call(
        kernel,
        out_shape=(part_shape, part_shape),
        grid_spec=pltpu.PrefetchScalarGridSpec(
            num_scalar_prefetch=0,
            grid=(num_slices, tiles_per_slice),
            in_specs=[
                pl.BlockSpec((tile_rows, LANES), in_map),
                pl.BlockSpec((tile_rows, LANES), in_map),
            ],
            out_specs=(
                pl.BlockSpec((SUBLANES, LANES), out_map),
                pl.BlockSpec((SUBLANES, LANES), out_map),
            ),
        ),
        compiler_params=pltpu.CompilerParams(
            dimension_semantics=("parallel", "arbitrary"),
        ),
    )(pred2d, mask2d)

    # Tiny epilogue on (<=16,128) partials: one small reduce + scalar math.
    # (For inputs this small, plain XLA would also be fine; kept in-wrapper
    # so the streaming kernel does only VPU work per step.)
    intersect = jnp.sum(partial_i)
    total = jnp.sum(partial_s)               # == sum(pred) + sum(mask)
    dice_score = 2.0 * intersect / (total + EPSILON)
    return 1.0 - dice_score


def _reference(pred, mask):
    pred = jnp.ravel(pred).astype(jnp.float32)
    mask = jnp.ravel(mask).astype(jnp.float32)
    intersect = jnp.sum(mask * pred)
    dice_score = 2.0 * intersect / (jnp.sum(pred) + jnp.sum(mask) + EPSILON)
    return 1.0 - dice_score


if __name__ == "__main__":
    key = jax.random.PRNGKey(0)
    k1, k2, k3, k4 = jax.random.split(key, 4)

    # Shape implied by the module: segmentation probabilities + binary mask,
    # NCHW (batch=2, C=4, H=16, W=16).
    pred = jax.nn.sigmoid(jax.random.normal(k1, (2, 4, 16, 16), dtype=jnp.float32))
    mask = (jax.random.uniform(k2, (2, 4, 16, 16)) > 0.5).astype(jnp.float32)

    loss = jax.block_until_ready(dice_loss(pred, mask))
    ref = _reference(pred, mask)
    assert jnp.allclose(loss, ref, rtol=1e-5, atol=1e-6), (loss, ref)

    # Extra checks exercising the ragged-tile, two-slice and clamped
    # phantom-tile code paths.
    for shape in [(2, 3, 5, 7), (320040,)]:
        p = jax.nn.sigmoid(jax.random.normal(k3, shape, dtype=jnp.float32))
        m = (jax.random.uniform(k4, shape) > 0.5).astype(jnp.float32)
        got = jax.block_until_ready(dice_loss(p, m))
        want = _reference(p, m)
        assert jnp.allclose(got, want, rtol=1e-4, atol=1e-5), (shape, got, want)

    print("KERNEL_OK")
</pallas_src>

<mosaic_0001>
module attributes {stable_mosaic.version = 11 : i64} {
  func.func @_dice_partial_kernel(%arg0: i32, %arg1: i32, %arg2: memref<16x128xf32, #tpu.memory_space<vmem>>, %arg3: memref<16x128xf32, #tpu.memory_space<vmem>>, %arg4: memref<8x128xf32, #tpu.memory_space<vmem>>, %arg5: memref<8x128xf32, #tpu.memory_space<vmem>>) attributes {dimension_semantics = [#tpu.dimension_semantics<parallel>, #tpu.dimension_semantics<arbitrary>], iteration_bounds = array<i64: 1, 1>, scalar_prefetch = 0 : i64, scratch_operands = 0 : i64, tpu.core_type = #tpu.core_type<tc>, window_params = [{transform_indices = @transform_0, window_bounds = array<i64: 16, 128>}, {transform_indices = @transform_1, window_bounds = array<i64: 16, 128>}, {transform_indices = @transform_2, window_bounds = array<i64: 8, 128>}, {transform_indices = @transform_3, window_bounds = array<i64: 8, 128>}]} {
    %c0_i32 = arith.constant 0 : i32
    %0 = arith.cmpi eq, %arg1, %c0_i32 : i32
    %1 = arith.extui %0 : i1 to i32
    %c0_i32_0 = arith.constant 0 : i32
    %2 = arith.cmpi ne, %1, %c0_i32_0 : i32
    scf.if %2 {
      %cst = arith.constant 0.000000e+00 : f32
      %19 = vector.broadcast %cst : f32 to vector<8x128xf32>
      %c0_15 = arith.constant 0 : index
      %c0_16 = arith.constant 0 : index
      %20 = vector.load %arg4[%c0_15, %c0_16] : memref<8x128xf32, #tpu.memory_space<vmem>>, vector<8x128xf32>
      tpu.vector_store %arg4[%c0_15, %c0_16], %19 {strides = array<i32>} : memref<8x128xf32, #tpu.memory_space<vmem>>, vector<8x128xf32>,
      %cst_17 = arith.constant 0.000000e+00 : f32
      %21 = vector.broadcast %cst_17 : f32 to vector<8x128xf32>
      %c0_18 = arith.constant 0 : index
      %c0_19 = arith.constant 0 : index
      %22 = vector.load %arg5[%c0_18, %c0_19] : memref<8x128xf32, #tpu.memory_space<vmem>>, vector<8x128xf32>
      tpu.vector_store %arg5[%c0_18, %c0_19], %21 {strides = array<i32>} : memref<8x128xf32, #tpu.memory_space<vmem>>, vector<8x128xf32>,
    } else {
    }
    %c0 = arith.constant 0 : index
    %c0_1 = arith.constant 0 : index
    %3 = vector.load %arg4[%c0, %c0_1] : memref<8x128xf32, #tpu.memory_space<vmem>>, vector<8x128xf32>
    %c0_2 = arith.constant 0 : index
    %c0_3 = arith.constant 0 : index
    %4 = vector.load %arg5[%c0_2, %c0_3] : memref<8x128xf32, #tpu.memory_space<vmem>>, vector<8x128xf32>
    %c0_4 = arith.constant 0 : index
    %c0_5 = arith.constant 0 : index
    %5 = vector.load %arg2[%c0_4, %c0_5] : memref<16x128xf32, #tpu.memory_space<vmem>>, vector<8x128xf32>
    %c0_6 = arith.constant 0 : index
    %c0_7 = arith.constant 0 : index
    %6 = vector.load %arg3[%c0_6, %c0_7] : memref<16x128xf32, #tpu.memory_space<vmem>>, vector<8x128xf32>
    %7 = arith.mulf %5, %6 : vector<8x128xf32>
    %8 = arith.addf %3, %7 : vector<8x128xf32>
    %9 = arith.addf %5, %6 : vector<8x128xf32>
    %10 = arith.addf %4, %9 : vector<8x128xf32>
    %c8 = arith.constant 8 : index
    %c0_8 = arith.constant 0 : index
    %11 = vector.load %arg2[%c8, %c0_8] : memref<16x128xf32, #tpu.memory_space<vmem>>, vector<8x128xf32>
    %c8_9 = arith.constant 8 : index
    %c0_10 = arith.constant 0 : index
    %12 = vector.load %arg3[%c8_9, %c0_10] : memref<16x128xf32, #tpu.memory_space<vmem>>, vector<8x128xf32>
    %13 = arith.mulf %11, %12 : vector<8x128xf32>
    %14 = arith.addf %8, %13 : vector<8x128xf32>
    %15 = arith.addf %11, %12 : vector<8x128xf32>
    %16 = arith.addf %10, %15 : vector<8x128xf32>
    %c0_11 = arith.constant 0 : index
    %c0_12 = arith.constant 0 : index
    %17 = vector.load %arg4[%c0_11, %c0_12] : memref<8x128xf32, #tpu.memory_space<vmem>>, vector<8x128xf32>
    tpu.vector_store %arg4[%c0_11, %c0_12], %14 {strides = array<i32>} : memref<8x128xf32, #tpu.memory_space<vmem>>, vector<8x128xf32>,
    %c0_13 = arith.constant 0 : index
    %c0_14 = arith.constant 0 : index
    %18 = vector.load %arg5[%c0_13, %c0_14] : memref<8x128xf32, #tpu.memory_space<vmem>>, vector<8x128xf32>
    tpu.vector_store %arg5[%c0_13, %c0_14], %16 {strides = array<i32>} : memref<8x128xf32, #tpu.memory_space<vmem>>, vector<8x128xf32>,
    return
  }
  func.func @transform_0(%arg0: i32, %arg1: i32) -> (i32, i32) {
    %c1_i32 = arith.constant 1 : i32
    %0 = arith.muli %arg0, %c1_i32 : i32
    %1 = arith.addi %0, %arg1 : i32
    %c0_i32 = arith.constant 0 : i32
    %c0_i32_0 = arith.constant 0 : i32
    return %1, %c0_i32 : i32, i32
  }
  func.func @transform_1(%arg0: i32, %arg1: i32) -> (i32, i32) {
    %c1_i32 = arith.constant 1 : i32
    %0 = arith.muli %arg0, %c1_i32 : i32
    %1 = arith.addi %0, %arg1 : i32
    %c0_i32 = arith.constant 0 : i32
    %c0_i32_0 = arith.constant 0 : i32
    return %1, %c0_i32 : i32, i32
  }
  func.func @transform_2(%arg0: i32, %arg1: i32) -> (i32, i32) {
    %c0_i32 = arith.constant 0 : i32
    %c0_i32_0 = arith.constant 0 : i32
    return %arg0, %c0_i32 : i32, i32
  }
  func.func @transform_3(%arg0: i32, %arg1: i32) -> (i32, i32) {
    %c0_i32 = arith.constant 0 : i32
    %c0_i32_0 = arith.constant 0 : i32
    return %arg0, %c0_i32 : i32, i32
  }
}

</mosaic_0001>

<llo_original>
// kernel: dice_loss.1
$region0: #{dice_loss.1}
  #allocation0 [shape = 'u32[]', space=smem, size = 0x4, offset = 0x4, fixed_abs, tag = 'smem constant byte address 0x4 - core index']
  #allocation1 [shape = 'u32[144,128]{1,0:T(1,128)}', space=vmem, size = 0x12000, scoped, tag = 'internal scratch']
  %s0 = inlined_call_operand.vmem [shape: f32[16,128], index: 0, kind: input, shape index: {}]
  %s1 = inlined_call_operand.vmem [shape: f32[16,128], index: 1, kind: input, shape index: {}]
  %s2 = inlined_call_operand.vmem [shape: f32[8,128], index: 2, kind: output, shape index: {0}]
  %s3 = inlined_call_operand.vmem [shape: f32[8,128], index: 3, kind: output, shape index: {1}]
  %4 = xla_tuple %s2, %s3
  %s5 = sld [smem:[#allocation0]]
  $region30: #{dice_loss.1} parent=0
    _
  %s7 = ssub.s32 1, %s5
  %s8 = scalar_select 0, %s7, %s5
  // Predicated region
  $region2: #{dice_loss.1} parent=0 // pred_check
    _
  $region3: #{dice_loss.1} parent=0 // pred_check_branch
    %10 = sbr.rel (0) target = $region5
  $region4: #{dice_loss.1} parent=0 // pred_region
    %s11 = sadd.s32 0, 0
    %s12 = smul.u32 2, %s11
    %p13 = scmp.lt.s32.totalorder %s12, 1
    %s14 = scalar_select %p13, %s12, 1
    %s15 = smul.addr %s14, 8
    %s16 = scalar_lea.vmem %s0, %s15
    %s17 = sadd.s32 0, 0
    %s18 = smul.u32 2, %s17
  $region5: #{dice_loss.1} parent=0 // pred_fallthru
    _
  // Predicated region
  $region6: #{dice_loss.1} parent=0 // pred_check
    _
  $region7: #{dice_loss.1} parent=0 // pred_check_branch
    %20 = sbr.rel (0) target = $region9
  $region8: #{dice_loss.1} parent=0 // pred_region
    %s21 = sadd.s32 0, 0
    %s22 = smul.u32 2, %s21
    %p23 = scmp.lt.s32.totalorder %s22, 1
    %s24 = scalar_select %p23, %s22, 1
    %s25 = smul.addr %s24, 8
    %s26 = scalar_lea.vmem %s1, %s25
    %s27 = sadd.s32 0, 0
    %s28 = smul.u32 2, %s27
  $region9: #{dice_loss.1} parent=0 // pred_fallthru
    _
  %s29 = sadd.s32 0, 0
  %s30 = smul.u32 2, %s29
  %p31 = scmp.lt.s32.totalorder %s30, 1
  %s32 = scalar_select %p31, %s30, 1
  %s33 = smul.addr %s32, 8
  %s34 = scalar_lea.vmem %s0, %s33
  %s35 = sadd.s32 0, 0
  %s36 = smul.u32 2, %s35
  %p37 = scmp.lt.s32.totalorder %s36, 1
  %s38 = scalar_select %p37, %s36, 1
  %s39 = smul.addr %s38, 8
  %s40 = scalar_lea.vmem %s1, %s39
  %s41 = sadd.s32 0, 0
  %s42 = smul.u32 2, %s41
  %p43 = scmp.lt.s32.totalorder %s42, 1
  %s44 = scalar_select %p43, %s42, 1
  %s45 = smul.addr %s44, 8
  %s46 = scalar_lea.vmem %s0, %s45
  %s47 = sadd.s32 0, 0
  %s48 = smul.u32 2, %s47
  %s49 = sadd.s32 0, 0
  %s50 = smul.u32 2, %s49
  %p51 = scmp.lt.s32.totalorder %s50, 1
  %s52 = scalar_select %p51, %s50, 1
  %s53 = smul.addr %s52, 8
  %s54 = scalar_lea.vmem %s1, %s53
  %s55 = sadd.s32 0, 0
  %s56 = smul.u32 2, %s55
  %p57 = scmp.eq.s32.totalorder 0, 0
  // Predicated region
  $region10: #{dice_loss.1} parent=0 // pred_check
    %p58 = pneg %p57
  $region11: #{dice_loss.1} parent=0 // pred_check_branch
    %60 = sbr.rel (%p58) target = $region13
  $region12: #{dice_loss.1} parent=0 // pred_region
    %61 = vst [vmem:[%s2] sm:$0xff] 0.0
    %62 = vst [vmem:[%s3] sm:$0xff] 0.0
  $region13: #{dice_loss.1} parent=0 // pred_fallthru
    _
  %v63 = vld [vmem:[%s2] sm:$0xff]
  %v64 = vld [vmem:[%s3] sm:$0xff]
  %v65 = vld [vmem:[%s46] sm:$0xff]
  %v66 = vld [vmem:[%s54] sm:$0xff]
  %v67 = vmul.f32 %v65, %v66
  %v68 = vadd.f32 %v63, %v67
  %v69 = vadd.f32 %v65, %v66
  %v70 = vadd.f32 %v64, %v69
  %v71 = vld [vmem:[%s46 + $0x8] sm:$0xff]
  %v72 = vld [vmem:[%s54 + $0x8] sm:$0xff]
  %v73 = vmul.f32 %v71, %v72
  %v74 = vadd.f32 %v68, %v73
  %v75 = vadd.f32 %v71, %v72
  %v76 = vadd.f32 %v70, %v75
  %77 = vst [vmem:[%s2] sm:$0xff] %v74
  %78 = vst [vmem:[%s3] sm:$0xff] %v76
  // Predicated region
  $region14: #{dice_loss.1} parent=0 // pred_check
    _
  $region15: #{dice_loss.1} parent=0 // pred_check_branch
    %80 = sbr.rel (0) target = $region17
  $region16: #{dice_loss.1} parent=0 // pred_region
    _
  $region17: #{dice_loss.1} parent=0 // pred_fallthru
    _
  // Predicated region
  $region18: #{dice_loss.1} parent=0 // pred_check
    _
  $region19: #{dice_loss.1} parent=0 // pred_check_branch
    %82 = sbr.rel (0) target = $region21
  $region20: #{dice_loss.1} parent=0 // pred_region
    _
  $region21: #{dice_loss.1} parent=0 // pred_fallthru
    _
  // Predicated region
  $region22: #{dice_loss.1} parent=0 // pred_check
    _
  $region23: #{dice_loss.1} parent=0 // pred_check_branch
    %84 = sbr.rel (0) target = $region25
  $region24: #{dice_loss.1} parent=0 // pred_region
    _
  $region25: #{dice_loss.1} parent=0 // pred_fallthru
    _
  // Predicated region
  $region26: #{dice_loss.1} parent=0 // pred_check
    _
  $region27: #{dice_loss.1} parent=0 // pred_check_branch
    %86 = sbr.rel (0) target = $region29
  $region28: #{dice_loss.1} parent=0 // pred_region
    _
  $region29: #{dice_loss.1} parent=0 // pred_fallthru
    _

</llo_original>
